<compile_context>
chip_gen: v7x
topology: tpu7x:2x2x1
jax: 0.10.0
libtpu: 0.0.40
codegen_flags: <defaults>
</compile_context>

<pallas_src>
import functools

import jax
import jax.numpy as jnp
from jax.experimental import pallas as pl
from jax.experimental.pallas import tpu as pltpu

_MIB = 1024 * 1024


# ---------------------------------------------------------------------------
# VMEM budgeting
# ---------------------------------------------------------------------------
def _vmem_limit_bytes():
    """Scoped-VMEM limit derived from the actual chip, with a safe fallback."""
    try:
        cap = int(pltpu.get_tpu_info().vmem_capacity_bytes)
    except Exception:
        cap = None
    if not cap or cap <= 0:
        cap = 64 * _MIB                       # conservative: v7x per-core VMEM
    # Leave headroom for Mosaic internal scratch and other live buffers.
    # v7x (64 MiB) -> 48 MiB; v5e/v6e (128 MiB) -> 96 MiB.
    return max(16 * _MIB, min((cap * 3) // 4, 96 * _MIB))


def _round_up(v, m):
    return ((v + m - 1) // m) * m


def _fused_fits(c, s, itemsize, vmem_limit):
    """Can one (1, C, S) sample slice be processed fully resident in VMEM?"""
    blk = c * s * itemsize
    need = 5 * blk + 2 * _MIB                 # 2x in + 2x out + elementwise slack
    if s % 128 != 0:
        need += c * s * 4                     # fp32 reduce temp (generic branch)
    return need <= vmem_limit


def _pick_spatial_tile(s_pad, c, itemsize, vmem_limit):
    """Largest 128-multiple divisor of s_pad whose (1, C, st) block fits the
    per-step VMEM budget (x in + out, double-buffered, + slack)."""
    block_cap = max(_MIB, min((vmem_limit - 4 * _MIB) // 5, 16 * _MIB))
    st_cap = max(128, (block_cap // (c * itemsize)) // 128 * 128)
    if s_pad <= st_cap:
        return s_pad
    best = 128                                 # 128 always divides s_pad
    t = 256
    while t <= st_cap:
        if s_pad % t == 0:
            best = t
        t += 128
    # TODO(synk): for pathological s_pad (128 * large prime) this degrades to
    # 128-lane tiles; padding S up to a multiple of st_cap would fix it.
    return best


# ---------------------------------------------------------------------------
# Kernels
# ---------------------------------------------------------------------------
def _fused_kernel(x_ref, w1_ref, w2_ref, o_ref, *, inv_s):
    """One sample per grid step: pool -> gate -> scale, all resident in VMEM.

    x_ref: (1, C, S)   w1_ref: (C, Cr)   w2_ref: (Cr, C)   o_ref: (1, C, S)
    """
    x = x_ref[...]                                    # (1, C, S)
    s = x.shape[2]

    # fp32 spatial sum.  When S is 128-aligned, sum lane-dense 128-wide chunks
    # (plain VPU adds, no full-size fp32 temp); otherwise use the generic reduce.
    if s % 128 == 0:
        part = x[:, :, 0:128].astype(jnp.float32)     # (1, C, 128)
        for k in range(1, s // 128):
            part = part + x[:, :, k * 128:(k + 1) * 128].astype(jnp.float32)
        pooled = jnp.sum(part, axis=2) * inv_s        # (1, C) fp32 mean
    else:
        pooled = jnp.sum(x.astype(jnp.float32), axis=2) * inv_s

    # Tiny excite path: (1,C) @ (C,Cr) -> relu -> @ (Cr,C) -> sigmoid.
    # Broadcast-multiply + sublane reduce (VPU/XLU) so it lowers cleanly for
    # arbitrary small C / C//r; negligible FLOPs either way.
    w1 = w1_ref[...].astype(jnp.float32)              # (C, Cr)
    w2 = w2_ref[...].astype(jnp.float32)              # (Cr, C)
    h = jnp.maximum(jnp.sum(pooled.T * w1, axis=0, keepdims=True), 0.0)  # (1, Cr)
    g = jnp.sum(h.T * w2, axis=0, keepdims=True)                          # (1, C)
    gate = jax.nn.sigmoid(g).astype(x.dtype)          # (1, C)

    o_ref[...] = (x * gate[:, :, None]).astype(o_ref.dtype)


def _pool_kernel(x_ref, sum_ref, acc_ref):
    """Streaming fp32 spatial-sum (two-pass fallback, pass 1).

    x_ref:   (1, C, st)   input tile, st % 128 == 0
    sum_ref: (1, C, 1)    fp32 output block, VMEM-resident across the tile axis
    acc_ref: (1, C, 128)  fp32 lane-dense scratch accumulator
    """
    t = pl.program_id(1)

    @pl.when(t == 0)
    def _():
        acc_ref[...] = jnp.zeros_like(acc_ref)

    st = x_ref.shape[2]
    part = x_ref[:, :, 0:128].astype(jnp.float32)
    for k in range(1, st // 128):
        part = part + x_ref[:, :, k * 128:(k + 1) * 128].astype(jnp.float32)
    acc_ref[...] += part

    # Cross-lane collapse + narrow store only once per sample.
    @pl.when(t == pl.num_programs(1) - 1)
    def _():
        sum_ref[...] = jnp.sum(acc_ref[...], axis=2, keepdims=True)


def _scale_kernel(x_ref, gate_ref, o_ref):
    """o = x * gate[n]  (two-pass fallback, pass 2).

    x_ref: (1, C, st)   gate_ref: (N, C) resident   o_ref: (1, C, st)
    """
    n = pl.program_id(0)
    g = gate_ref[pl.ds(n, 1), :]                      # (1, C), tiny row load
    o_ref[...] = (x_ref[...] * g[:, :, None]).astype(o_ref.dtype)


# ---------------------------------------------------------------------------
# Wrapper
# ---------------------------------------------------------------------------
def se_layer_pallas(x_ncdhw, w1, w2, *, donate_input=False,
                    force_two_pass=False, vmem_limit_bytes=None):
    """SELayer forward.  x: (N, C, D, H, W); w1: (C, C//r); w2: (C//r, C).

    w{1,2} are the matmul forms of the PyTorch 1x1x1 conv weights:
      w1 = conv1.weight[:, :, 0, 0, 0].T   -> (C,  C//r)
      w2 = conv2.weight[:, :, 0, 0, 0].T   -> (C//r, C)
    """
    N, C, D, H, W = x_ncdhw.shape
    S = D * H * W
    itemsize = jnp.dtype(x_ncdhw.dtype).itemsize
    vmem_limit = vmem_limit_bytes or _vmem_limit_bytes()
    inv_s = float(1.0 / S)

    # Free contiguous reshape: NCDHW -> (N, C, S); spatial is lane-dense.
    x_ncs = x_ncdhw.reshape(N, C, S)
    io_alias = {0: 0} if donate_input else {}

    # ---------------- Fused single pass: 1 read + 1 write of x. -------------
    if (not force_two_pass) and _fused_fits(C, S, itemsize, vmem_limit):
        out_ncs = pl.pallas_call(
            functools.partial(_fused_kernel, inv_s=inv_s),
            out_shape=jax.ShapeDtypeStruct((N, C, S), x_ncdhw.dtype),
            grid=(N,),
            in_specs=[
                pl.BlockSpec((1, C, S), lambda n: (n, 0, 0)),
                pl.BlockSpec((C, w1.shape[1]), lambda n: (0, 0)),
                pl.BlockSpec((w2.shape[0], C), lambda n: (0, 0)),
            ],
            out_specs=pl.BlockSpec((1, C, S), lambda n: (n, 0, 0)),
            input_output_aliases=io_alias,
            compiler_params=pltpu.CompilerParams(
                dimension_semantics=("parallel",),
                vmem_limit_bytes=vmem_limit),
        )(x_ncs, w1, w2)
        return out_ncs.reshape(N, C, D, H, W)

    # ---------------- Two-pass fallback (slice too big for VMEM). -----------
    # Pad the spatial axis to a multiple of 128 (zeros don't perturb the sum;
    # the mean divides by the true S).
    S_pad = _round_up(S, 128)
    if S_pad != S:
        x_ncs = jnp.pad(x_ncs, ((0, 0), (0, 0), (0, S_pad - S)))

    st = _pick_spatial_tile(S_pad, C, itemsize, vmem_limit)
    assert st % 128 == 0 and S_pad % st == 0
    n_st = S_pad // st

    # Pass 1: per-(n, c) spatial sums (fp32) with a lane-dense accumulator.
    sums = pl.pallas_call(
        _pool_kernel,
        out_shape=jax.ShapeDtypeStruct((N, C, 1), jnp.float32),
        grid=(N, n_st),
        in_specs=[pl.BlockSpec((1, C, st), lambda n, t: (n, 0, t))],
        out_specs=pl.BlockSpec((1, C, 1), lambda n, t: (n, 0, 0)),
        scratch_shapes=[pltpu.VMEM((1, C, 128), jnp.float32)],
        compiler_params=pltpu.CompilerParams(
            dimension_semantics=("parallel", "arbitrary"),
            vmem_limit_bytes=vmem_limit),
    )(x_ncs)
    # TODO(synk): on v7x with N == 1 this pooling pass keeps one TensorCore
    # idle; splitting the tile axis into a leading parallel half (two partial
    # sums added in the gate step) would recover it.

    # Tiny excite path (fp32, negligible FLOPs) in plain JAX.
    pooled = sums[:, :, 0] * jnp.float32(inv_s)                  # (N, C)
    h = jnp.maximum(pooled @ w1.astype(jnp.float32), 0.0)        # (N, Cr)
    gate = jax.nn.sigmoid(h @ w2.astype(jnp.float32))            # (N, C)
    gate = gate.astype(x_ncdhw.dtype)                            # resident block

    # Pass 2: streaming multiply, lane-dense blocks, gate resident once.
    # TODO(synk): if xprof shows exposed DMA here, try pipeline_mode=pl.Buffered(3)
    # on the x in_spec (only if VMEM headroom remains, tighter on v7x).
    out_ncs = pl.pallas_call(
        _scale_kernel,
        out_shape=jax.ShapeDtypeStruct((N, C, S_pad), x_ncdhw.dtype),
        grid=(N, n_st),
        in_specs=[
            pl.BlockSpec((1, C, st), lambda n, t: (n, 0, t)),
            pl.BlockSpec((N, C), lambda n, t: (0, 0)),
        ],
        out_specs=pl.BlockSpec((1, C, st), lambda n, t: (n, 0, t)),
        input_output_aliases=io_alias if S_pad == S else {},
        compiler_params=pltpu.CompilerParams(
            dimension_semantics=("parallel", "parallel"),
            vmem_limit_bytes=vmem_limit),
    )(x_ncs, gate)

    if S_pad != S:
        out_ncs = out_ncs[:, :, :S]
    return out_ncs.reshape(N, C, D, H, W)


def se_layer_ref(x_ncdhw, w1, w2):
    """Pure-JAX reference matching the PyTorch module."""
    pooled = jnp.mean(x_ncdhw, axis=(2, 3, 4))            # (N, C)
    h = jnp.maximum(pooled @ w1, 0.0)                     # (N, Cr)
    s = jax.nn.sigmoid(h @ w2)                            # (N, C)
    return x_ncdhw * s[:, :, None, None, None]


if __name__ == "__main__":
    key = jax.random.PRNGKey(0)
    kx, k1, k2, kx2 = jax.random.split(key, 4)

    # Small shapes consistent with the module: channel=8, reduction=4.
    N, C, reduction = 2, 8, 4
    Cr = C // reduction

    w1 = jax.random.normal(k1, (C, Cr), dtype=jnp.float32) * 0.5
    w2 = jax.random.normal(k2, (Cr, C), dtype=jnp.float32) * 0.5

    def check(x, **kw):
        out = jax.block_until_ready(se_layer_pallas(x, w1, w2, **kw))
        ref = se_layer_ref(x, w1, w2)
        assert out.shape == x.shape
        assert jnp.allclose(out, ref, atol=1e-5, rtol=1e-5), "mismatch vs reference"

    # Fused single-pass path (S = 64 < 128, generic reduce branch).
    x_small = jax.random.normal(kx, (N, C, 4, 4, 4), dtype=jnp.float32)
    check(x_small)

    # Fused single-pass path, 128-aligned chunked-reduce branch (S = 256).
    x_aligned = jax.random.normal(kx2, (N, C, 4, 8, 8), dtype=jnp.float32)
    check(x_aligned)

    # Two-pass fallback: padded spatial axis (S = 64 -> 128) ...
    check(x_small, force_two_pass=True)
    # ... and 128-aligned spatial axis (no padding).
    check(x_aligned, force_two_pass=True)

    print("KERNEL_OK")
</pallas_src>

<mosaic_0001>
module attributes {stable_mosaic.version = 11 : i64} {
  func.func @_fused_kernel(%arg0: i32, %arg1: memref<1x8x64xf32, #tpu.memory_space<vmem>>, %arg2: memref<8x2xf32, #tpu.memory_space<vmem>>, %arg3: memref<2x8xf32, #tpu.memory_space<vmem>>, %arg4: memref<1x8x64xf32, #tpu.memory_space<vmem>>) attributes {dimension_semantics = [#tpu.dimension_semantics<parallel>], iteration_bounds = array<i64: 2>, scalar_prefetch = 0 : i64, scratch_operands = 0 : i64, tpu.core_type = #tpu.core_type<tc>, window_params = [{transform_indices = @transform_0, window_bounds = array<i64: 1, 8, 64>}, {pipeline_mode = #tpu.pipeline_mode<synchronous>, transform_indices = @transform_1, window_bounds = array<i64: 8, 2>}, {pipeline_mode = #tpu.pipeline_mode<synchronous>, transform_indices = @transform_2, window_bounds = array<i64: 2, 8>}, {transform_indices = @transform_3, window_bounds = array<i64: 1, 8, 64>}]} {
    %c0 = arith.constant 0 : index
    %c0_0 = arith.constant 0 : index
    %c0_1 = arith.constant 0 : index
    %0 = vector.load %arg1[%c0, %c0_0, %c0_1] : memref<1x8x64xf32, #tpu.memory_space<vmem>>, vector<1x8x64xf32>
    %cst = arith.constant dense<0.000000e+00> : vector<1x8xf32>
    %1 = vector.multi_reduction <add>, %0, %cst [2] : vector<1x8x64xf32> to vector<1x8xf32>
    %cst_2 = arith.constant 1.562500e-02 : f32
    %2 = vector.broadcast %cst_2 : f32 to vector<1x8xf32>
    %3 = arith.mulf %1, %2 : vector<1x8xf32>
    %c0_3 = arith.constant 0 : index
    %c0_4 = arith.constant 0 : index
    %4 = vector.load %arg2[%c0_3, %c0_4] : memref<8x2xf32, #tpu.memory_space<vmem>>, vector<8x2xf32>
    %c0_5 = arith.constant 0 : index
    %c0_6 = arith.constant 0 : index
    %5 = vector.load %arg3[%c0_5, %c0_6] : memref<2x8xf32, #tpu.memory_space<vmem>>, vector<2x8xf32>
    %6 = tpu.transpose %3, [1, 0] : vector<1x8xf32> -> vector<8x1xf32>
    %7 = vector.broadcast %6 : vector<8x1xf32> to vector<8x2xf32>
    %8 = arith.mulf %7, %4 : vector<8x2xf32>
    %cst_7 = arith.constant dense<0.000000e+00> : vector<2xf32>
    %9 = vector.multi_reduction <add>, %8, %cst_7 [0] : vector<8x2xf32> to vector<2xf32>
    %10 = vector.shape_cast %9 : vector<2xf32> to vector<1x2xf32>
    %cst_8 = arith.constant 0.000000e+00 : f32
    %11 = vector.broadcast %cst_8 : f32 to vector<1x2xf32>
    %12 = arith.maximumf %10, %11 : vector<1x2xf32>
    %13 = tpu.transpose %12, [1, 0] : vector<1x2xf32> -> vector<2x1xf32>
    %14 = vector.broadcast %13 : vector<2x1xf32> to vector<2x8xf32>
    %15 = arith.mulf %14, %5 : vector<2x8xf32>
    %cst_9 = arith.constant dense<0.000000e+00> : vector<8xf32>
    %16 = vector.multi_reduction <add>, %15, %cst_9 [0] : vector<2x8xf32> to vector<8xf32>
    %17 = vector.shape_cast %16 : vector<8xf32> to vector<1x8xf32>
    %18 = arith.negf %17 : vector<1x8xf32>
    %19 = math.exp %18 : vector<1x8xf32>
    %cst_10 = arith.constant 1.000000e+00 : f32
    %20 = vector.broadcast %cst_10 : f32 to vector<1x8xf32>
    %21 = arith.addf %20, %19 : vector<1x8xf32>
    %22 = arith.divf %20, %21 : vector<1x8xf32>
    %23 = vector.shape_cast %22 : vector<1x8xf32> to vector<1x8x1xf32>
    %24 = vector.broadcast %23 : vector<1x8x1xf32> to vector<1x8x64xf32>
    %25 = arith.mulf %0, %24 : vector<1x8x64xf32>
    %c0_11 = arith.constant 0 : index
    %c0_12 = arith.constant 0 : index
    %c0_13 = arith.constant 0 : index
    %26 = vector.load %arg4[%c0_11, %c0_12, %c0_13] : memref<1x8x64xf32, #tpu.memory_space<vmem>>, vector<1x8x64xf32>
    tpu.vector_store %arg4[%c0_11, %c0_12, %c0_13], %25 {strides = array<i32>} : memref<1x8x64xf32, #tpu.memory_space<vmem>>, vector<1x8x64xf32>,
    return
  }
  func.func @transform_0(%arg0: i32) -> (i32, i32, i32) {
    %c0_i32 = arith.constant 0 : i32
    %c0_i32_0 = arith.constant 0 : i32
    %c0_i32_1 = arith.constant 0 : i32
    return %arg0, %c0_i32, %c0_i32_0 : i32, i32, i32
  }
  func.func @transform_1(%arg0: i32) -> (i32, i32) {
    %c0_i32 = arith.constant 0 : i32
    %c0_i32_0 = arith.constant 0 : i32
    %c0_i32_1 = arith.constant 0 : i32
    return %c0_i32, %c0_i32_0 : i32, i32
  }
  func.func @transform_2(%arg0: i32) -> (i32, i32) {
    %c0_i32 = arith.constant 0 : i32
    %c0_i32_0 = arith.constant 0 : i32
    %c0_i32_1 = arith.constant 0 : i32
    return %c0_i32, %c0_i32_0 : i32, i32
  }
  func.func @transform_3(%arg0: i32) -> (i32, i32, i32) {
    %c0_i32 = arith.constant 0 : i32
    %c0_i32_0 = arith.constant 0 : i32
    %c0_i32_1 = arith.constant 0 : i32
    return %arg0, %c0_i32, %c0_i32_0 : i32, i32, i32
  }
}

</mosaic_0001>

<llo_original>
// kernel: tpu_custom_call.1
$region0: #{tpu_custom_call.1}
  #allocation0 [shape = 'u32[]', space=smem, size = 0x4, offset = 0x4, fixed_abs, tag = 'smem constant byte address 0x4 - core index']
  #allocation1 [shape = 'u32[144,128]{1,0:T(1,128)}', space=vmem, size = 0x12000, scoped, tag = 'internal scratch']
  %s0 = inlined_call_operand.hbm [shape: f32[2,8,64], index: 0, kind: input, shape index: {}]
  %s1 = inlined_call_operand.vmem [shape: f32[8,2], index: 1, kind: input, shape index: {}]
  %s2 = inlined_call_operand.vmem [shape: f32[2,8], index: 2, kind: input, shape index: {}]
  %s3 = inlined_call_operand.hbm [shape: f32[2,8,64], index: 3, kind: output, shape index: {}]
  %s4 = sld [smem:[#allocation0]]
  $region49: #{tpu_custom_call.1} parent=0
    _
  %s6 = ssub.s32 1, %s4
  %s7 = scalar_select 0, %s6, %s4
  $region1: #{tpu_custom_call.1} parent=0
    #allocation2 [shape = 'u8[8192]{0}', space=vmem, size = 0x2000, scoped, tag = 'input window, operand 0']
    #allocation3 [shape = 's32[2]{0}', space=sflag, size = 0x8, scoped, tag = 'scoped memory for tpu_custom_call.1']
    #allocation4 [shape = 's32[2]{0}', space=sflag, size = 0x8, scoped, tag = 'scoped memory for tpu_custom_call.1']
    #allocation5 [shape = 'u8[8192]{0}', space=vmem, size = 0x2000, scoped, tag = 'output window, operand 0']
    %8 = vsyncpa [#allocation3], 0
    %s9 = scalar_lea.sflag [#allocation3], 1
    %10 = vsyncpa %s9, 0
    %11 = vsyncpa [#allocation4], 0
    %s12 = scalar_lea.sflag [#allocation4], 1
    %13 = vsyncpa %s12, 0
    loop: start=0, step=1, limit=4
    $region2: #{tpu_custom_call.1} parent=1 // loop_pre_header
      _
    $region3: #{tpu_custom_call.1} parent=1 // loop_header
      %s15 = sphi 0, %s19
      %p16 = scmp.ge.s32.totalorder %s15, 4
      %s25 = sphi 0, %s27
      %s28 = sphi 0, %s25
      %s29 = sphi 0, %s28
      %s45 = sphi 0, %s29
      %s49 = sphi 0, %s49
      %s51 = sphi 0, %s49
      %s52 = sphi 0, %s51
      %s66 = sphi 0, %s52
      %s70 = sphi 0, %s70
      %s72 = sphi 0, %s70
      %s73 = sphi 0, %s72
      %s87 = sphi 0, %s73
      %s93 = sphi 0, %s95
      %s96 = sphi 0, %s93
      %s97 = sphi 0, %s96
      %s113 = sphi 0, %s97
    $region4: #{tpu_custom_call.1} parent=1 // loop_header_branch
      %18 = sbr.rel (%p16) target = $region8
    $region5: #{tpu_custom_call.1} parent=1 // loop_body
      %s20 = ssub.s32 %s15, 1
      %s21 = ssub.s32 %s15, 2
      %s22 = sadd.s32 %s15, 1
      %s23 = ssub.s32 %s15, %s22
      %p24 = scmp.eq.s32.totalorder %s23, 0
      %s26 = sadd.s32 %s25, 1
      %s27 = scalar_select %p24, %s25, %s26
      %p30 = pneg %p24
      %p31 = scmp.eq.s32.totalorder %s15, 1
      %p32 = por %p30, %p31
      %p33 = scmp.ne.s32.totalorder %s25, %s28
      %p34 = scmp.eq.s32.totalorder %s15, 0
      %p35 = por %p33, %p34
      %p36 = scmp.ne.s32.totalorder %s25, %s28
      %p37 = scmp.eq.s32.totalorder %s20, 1
      %p38 = por %p36, %p37
      %p39 = scmp.ne.s32.totalorder %s28, %s29
      %p40 = scmp.eq.s32.totalorder %s20, 0
      %p41 = por %p39, %p40
      %p42 = scmp.ne.s32.totalorder %s28, %s29
      %p43 = scmp.eq.s32.totalorder %s21, 1
      %p44 = por %p42, %p43
      %p46 = scmp.ne.s32.totalorder %s29, %s45
      %p47 = scmp.eq.s32.totalorder %s21, 0
      %p48 = por %p46, %p47
      %s50 = sadd.s32 %s49, 1
      %p53 = scmp.eq.s32.totalorder %s15, 1
      %p54 = scmp.ne.s32.totalorder %s49, %s51
      %p55 = scmp.eq.s32.totalorder %s15, 0
      %p56 = por %p54, %p55
      %p57 = scmp.ne.s32.totalorder %s49, %s51
      %p58 = scmp.eq.s32.totalorder %s20, 1
      %p59 = por %p57, %p58
      %p60 = scmp.ne.s32.totalorder %s51, %s52
      %p61 = scmp.eq.s32.totalorder %s20, 0
      %p62 = por %p60, %p61
      %p63 = scmp.ne.s32.totalorder %s51, %s52
      %p64 = scmp.eq.s32.totalorder %s21, 1
      %p65 = por %p63, %p64
      %p67 = scmp.ne.s32.totalorder %s52, %s66
      %p68 = scmp.eq.s32.totalorder %s21, 0
      %p69 = por %p67, %p68
      %s71 = sadd.s32 %s70, 1
      %p74 = scmp.eq.s32.totalorder %s15, 1
      %p75 = scmp.ne.s32.totalorder %s70, %s72
      %p76 = scmp.eq.s32.totalorder %s15, 0
      %p77 = por %p75, %p76
      %p78 = scmp.ne.s32.totalorder %s70, %s72
      %p79 = scmp.eq.s32.totalorder %s20, 1
      %p80 = por %p78, %p79
      %p81 = scmp.ne.s32.totalorder %s72, %s73
      %p82 = scmp.eq.s32.totalorder %s20, 0
      %p83 = por %p81, %p82
      %p84 = scmp.ne.s32.totalorder %s72, %s73
      %p85 = scmp.eq.s32.totalorder %s21, 1
      %p86 = por %p84, %p85
      %p88 = scmp.ne.s32.totalorder %s73, %s87
      %p89 = scmp.eq.s32.totalorder %s21, 0
      %p90 = por %p88, %p89
      %s91 = ssub.s32 %s15, %s22
      %p92 = scmp.eq.s32.totalorder %s91, 0
      %s94 = sadd.s32 %s93, 1
      %s95 = scalar_select %p92, %s93, %s94
      %p98 = pneg %p92
      %p99 = scmp.eq.s32.totalorder %s15, 1
      %p100 = por %p98, %p99
      %p101 = scmp.ne.s32.totalorder %s93, %s96
      %p102 = scmp.eq.s32.totalorder %s15, 0
      %p103 = por %p101, %p102
      %p104 = scmp.ne.s32.totalorder %s93, %s96
      %p105 = scmp.eq.s32.totalorder %s20, 1
      %p106 = por %p104, %p105
      %p107 = scmp.ne.s32.totalorder %s96, %s97
      %p108 = scmp.eq.s32.totalorder %s20, 0
      %p109 = por %p107, %p108
      %p110 = scmp.ne.s32.totalorder %s96, %s97
      %p111 = scmp.eq.s32.totalorder %s21, 1
      %p112 = por %p110, %p111
      %p114 = scmp.ne.s32.totalorder %s97, %s113
      %p115 = scmp.eq.s32.totalorder %s21, 0
      %p116 = por %p114, %p115
      %p117 = scmp.le.s32.totalorder 1, %s15
      %p118 = scmp.lt.s32.totalorder %s15, 3
      %p119 = pnand %p117, %p118
      %p120 = pneg %p119
      // Predicated region
      $region9: #{tpu_custom_call.1} parent=5 // pred_check
        _
      $region10: #{tpu_custom_call.1} parent=5 // pred_check_branch
        %122 = sbr.rel (%p119) target = $region12
      $region11: #{tpu_custom_call.1} parent=5 // pred_region
        %s123 = ssub.s32 %s15, 1
        // Predicated region
        $region13: #{tpu_custom_call.1} parent=11 // pred_check
          %p124 = pneg %p62
        $region14: #{tpu_custom_call.1} parent=11 // pred_check_branch
          %126 = sbr.rel (%p124) target = $region16
        $region15: #{tpu_custom_call.1} parent=11 // pred_region
          _
        $region16: #{tpu_custom_call.1} parent=11 // pred_fallthru
          _
        // Predicated region
        $region17: #{tpu_custom_call.1} parent=11 // pred_check
          %p127 = pneg %p83
        $region18: #{tpu_custom_call.1} parent=11 // pred_check_branch
          %129 = sbr.rel (%p127) target = $region20
        $region19: #{tpu_custom_call.1} parent=11 // pred_region
          _
        $region20: #{tpu_custom_call.1} parent=11 // pred_fallthru
          _
      $region12: #{tpu_custom_call.1} parent=5 // pred_fallthru
        _
      %p130 = scmp.lt.s32.totalorder %s15, 2
      // Predicated region
      $region21: #{tpu_custom_call.1} parent=5 // pred_check
        %p131 = pneg %p130
      $region22: #{tpu_custom_call.1} parent=5 // pred_check_branch
        %133 = sbr.rel (%p131) target = $region24
      $region23: #{tpu_custom_call.1} parent=5 // pred_region
        // Predicated region
        $region25: #{tpu_custom_call.1} parent=23 // pred_check
          %p134 = pneg %p35
        $region26: #{tpu_custom_call.1} parent=23 // pred_check_branch
          %136 = sbr.rel (%p134) target = $region28
        $region27: #{tpu_custom_call.1} parent=23 // pred_region
          %s137 = sand.u32 %s25, 1
          %s138 = scalar_lea.sflag [#allocation3], %s137
          %s139 = sand.u32 %s25, 1
          %s140 = smul.addr %s139, 8
          %s141 = scalar_lea.vmem [#allocation2], %s140
          %s143 = ssub.s32 128, 128
          %144 = vsyncadd %s138, %s143
          %s145 = smul.addr %s15, 128
          %s146 = scalar_lea.hbm %s0, %s145
          %s148 = sshll.u32 %s141, 4
          %s149 = int_to_ptr.vmem [resolvable:$true] %s148
          %151 = dma.hbm_to_vmem [thread:$0]  %s146, 128, %s149, %s138
        $region28: #{tpu_custom_call.1} parent=23 // pred_fallthru
          _
      $region24: #{tpu_custom_call.1} parent=5 // pred_fallthru
        _
      %p152 = scmp.le.s32.totalorder 1, %s15
      %p153 = scmp.lt.s32.totalorder %s15, 3
      %p154 = pnand %p152, %p153
      %p155 = pneg %p154
      // Predicated region
      $region29: #{tpu_custom_call.1} parent=5 // pred_check
        _
      $region30: #{tpu_custom_call.1} parent=5 // pred_check_branch
        %157 = sbr.rel (%p154) target = $region32
      $region31: #{tpu_custom_call.1} parent=5 // pred_region
        %s158 = ssub.s32 %s15, 1
        %s159 = sand.u32 %s28, 1
        %s160 = scalar_lea.sflag [#allocation3], %s159
        %s161 = sand.u32 %s28, 1
        %s162 = smul.addr %s161, 8
        %s163 = scalar_lea.vmem [#allocation2], %s162
        // Predicated region
        $region33: #{tpu_custom_call.1} parent=31 // pred_check
          %p164 = pneg %p41
        $region34: #{tpu_custom_call.1} parent=31 // pred_check_branch
          %166 = sbr.rel (%p164) target = $region36
        $region35: #{tpu_custom_call.1} parent=31 // pred_region
          %167 = dma.done %s160, 128
        $region36: #{tpu_custom_call.1} parent=31 // pred_fallthru
          _
        %s168 = sand.u32 %s28, 1
        %s169 = scalar_lea.sflag [#allocation3], %s168
        %s170 = sand.u32 %s28, 1
        %s171 = smul.addr %s170, 8
        %s172 = scalar_lea.vmem [#allocation2], %s171
        %p173 = pneg %p41
        %p174 = pneg %p38
        %p175 = pneg %p62
        %p176 = pneg %p59
        %p177 = pneg %p83
        %p178 = pneg %p80
        %p179 = pneg %p109
        %p180 = pneg %p106
        %s181 = sand.u32 %s96, 1
        %s182 = scalar_lea.sflag [#allocation4], %s181
        %s183 = sand.u32 %s96, 1
        %s184 = smul.addr %s183, 8
        %s185 = scalar_lea.vmem [#allocation5], %s184
        %v186 = vld [vmem:[%s163] sm:$0xff]
        %vm187 = vcmask 523264
        %v188 = vsel %vm187, %v186, 0.0
        %189 = vadd.xlane.f32.xlu0 %v188
        %v190 = vpop.xlane.xlu0 %189
        %v191 = vmul.f32 %v190, 0.015625
        %v192 = vld [vmem:[%s1] sm:$0xff]
        %v193 = vld [vmem:[%s2] sm:$0x3]
        %v195 = vlaneseq
        %v196 = vand.u32 %v195, 127
        %v197 = vlaneseq
        %v198 = vshrl.u32 %v197, 7
        %v199 = vsub.s32 %v196, %v198
        %v200 = vrot.slane %v191, %v199
        %202 = vxpose.xlu0.b32.start [1/16] %v200, 128
        %203 = vxpose.xlu0.b32.cont [2/16] 0.0, 128
        %204 = vxpose.xlu0.b32.cont [3/16] 0.0, 128
        %205 = vxpose.xlu0.b32.cont [4/16] 0.0, 128
        %206 = vxpose.xlu0.b32.cont [5/16] 0.0, 128
        %207 = vxpose.xlu0.b32.cont [6/16] 0.0, 128
        %208 = vxpose.xlu0.b32.cont [7/16] 0.0, 128
        %209 = vxpose.xlu0.b32.cont [8/16] 0.0, 128
        %210 = vxpose.xlu0.b32.cont [9/16] 0.0, 128
        %211 = vxpose.xlu0.b32.cont [10/16] 0.0, 128
        %212 = vxpose.xlu0.b32.cont [11/16] 0.0, 128
        %213 = vxpose.xlu0.b32.cont [12/16] 0.0, 128
        %214 = vxpose.xlu0.b32.cont [13/16] 0.0, 128
        %215 = vxpose.xlu0.b32.cont [14/16] 0.0, 128
        %216 = vxpose.xlu0.b32.cont [15/16] 0.0, 128
        %217 = vxpose.xlu0.b32.end [16/16] 0.0, 128
        %v218 = vpop.trf.xlu0
        %v219 = vpop.trf.xlu0
        %v220 = vpop.trf.xlu0
        %v221 = vpop.trf.xlu0
        %v222 = vpop.trf.xlu0
        %v223 = vpop.trf.xlu0
        %v224 = vpop.trf.xlu0
        %v225 = vpop.trf.xlu0
        %v226 = vpop.trf.xlu0
        %v227 = vpop.trf.xlu0
        %v228 = vpop.trf.xlu0
        %v229 = vpop.trf.xlu0
        %v230 = vpop.trf.xlu0
        %v231 = vpop.trf.xlu0
        %v232 = vpop.trf.xlu0
        %v233 = vpop.trf.xlu0
        %235 = vset.pattern.permute.xlu0 0
        %236 = vperm.xlu0 %235, %v218
        %v237 = vpop.permute.xlu0 %236
        %v239 = vmul.f32 %v237, %v192
        %vm240 = vcmask 15360
        %v241 = vsel %vm240, %v239, 0.0
        %v242 = vrot.slane %v241, 4
        %v243 = vadd.f32 %v241, %v242
        %v244 = vrot.slane %v243, 2
        %v245 = vadd.f32 %v243, %v244
        %v246 = vrot.slane %v245, 1
        %v247 = vadd.f32 %v245, %v246
        %v248 = vmax.f32 %v247, 0.0
        %249 = vxpose.xlu0.b32.start [1/16] %v248, 128
        %250 = vxpose.xlu0.b32.cont [2/16] 0.0, 128
        %251 = vxpose.xlu0.b32.cont [3/16] 0.0, 128
        %252 = vxpose.xlu0.b32.cont [4/16] 0.0, 128
        %253 = vxpose.xlu0.b32.cont [5/16] 0.0, 128
        %254 = vxpose.xlu0.b32.cont [6/16] 0.0, 128
        %255 = vxpose.xlu0.b32.cont [7/16] 0.0, 128
        %256 = vxpose.xlu0.b32.cont [8/16] 0.0, 128
        %257 = vxpose.xlu0.b32.cont [9/16] 0.0, 128
        %258 = vxpose.xlu0.b32.cont [10/16] 0.0, 128
        %259 = vxpose.xlu0.b32.cont [11/16] 0.0, 128
        %260 = vxpose.xlu0.b32.cont [12/16] 0.0, 128
        %261 = vxpose.xlu0.b32.cont [13/16] 0.0, 128
        %262 = vxpose.xlu0.b32.cont [14/16] 0.0, 128
        %263 = vxpose.xlu0.b32.cont [15/16] 0.0, 128
        %264 = vxpose.xlu0.b32.end [16/16] 0.0, 128
        %v265 = vpop.trf.xlu0
        %v266 = vpop.trf.xlu0
        %v267 = vpop.trf.xlu0
        %v268 = vpop.trf.xlu0
        %v269 = vpop.trf.xlu0
        %v270 = vpop.trf.xlu0
        %v271 = vpop.trf.xlu0
        %v272 = vpop.trf.xlu0
        %v273 = vpop.trf.xlu0
        %v274 = vpop.trf.xlu0
        %v275 = vpop.trf.xlu0
        %v276 = vpop.trf.xlu0
        %v277 = vpop.trf.xlu0
        %v278 = vpop.trf.xlu0
        %v279 = vpop.trf.xlu0
        %v280 = vpop.trf.xlu0
        %282 = vset.pattern.permute.xlu0 0
        %283 = vperm.xlu0 %282, %v265
        %v284 = vpop.permute.xlu0 %283
        %v286 = vmul.f32 %v284, %v193
        %vm287 = vcmask 58368
        %v288 = vsel %vm287, %v286, 0.0
        %v289 = vrot.slane %v288, 4
        %v290 = vadd.f32 %v288, %v289
        %v291 = vrot.slane %v290, 2
        %v292 = vadd.f32 %v290, %v291
        %v293 = vrot.slane %v292, 1
        %v294 = vadd.f32 %v292, %v293
        %v295 = vxor.u32 %v294, 2147483648
        %v296 = vmul.f32 %v295, 1.442695
        %v297 = vpow.pop %v296
        %v298 = vadd.f32 %v297, 1.0
        %v299 = vrcp.pop %v298
        %v300 = vmul.f32 1.0, %v299
        %302 = vbcast.lane.b32.xlu0 %v300, 256
        %v303 = vpop.permute.xlu0 %302
        %v304 = vmul.f32 %v186, %v303
        %305 = vst.msk [vmem:[%s185] sm:$0xff] %vm187, %v304
        %s306 = sand.u32 %s96, 1
        %s307 = scalar_lea.sflag [#allocation4], %s306
        %s308 = sand.u32 %s96, 1
        %s309 = smul.addr %s308, 8
        %s310 = scalar_lea.vmem [#allocation5], %s309
        // Predicated region
        $region37: #{tpu_custom_call.1} parent=31 // pred_check
          %p311 = pneg %p106
        $region38: #{tpu_custom_call.1} parent=31 // pred_check_branch
          %313 = sbr.rel (%p311) target = $region40
        $region39: #{tpu_custom_call.1} parent=31 // pred_region
          %s315 = ssub.s32 128, 128
          %316 = vsyncadd %s307, %s315
          %s317 = smul.addr %s20, 128
          %s318 = scalar_lea.hbm %s3, %s317
          %s320 = sshll.u32 %s310, 4
          %s321 = int_to_ptr.vmem [resolvable:$true] %s320
          %323 = dma.vmem_to_hbm [thread:$0]  %s321, 128, %s318, %s307
        $region40: #{tpu_custom_call.1} parent=31 // pred_fallthru
          _
      $region32: #{tpu_custom_call.1} parent=5 // pred_fallthru
        _
      %p324 = scmp.le.s32.totalorder 2, %s15
      // Predicated region
      $region41: #{tpu_custom_call.1} parent=5 // pred_check
        %p325 = pneg %p324
      $region42: #{tpu_custom_call.1} parent=5 // pred_check_branch
        %327 = sbr.rel (%p325) target = $region44
      $region43: #{tpu_custom_call.1} parent=5 // pred_region
        %s328 = ssub.s32 %s15, 2
        // Predicated region
        $region45: #{tpu_custom_call.1} parent=43 // pred_check
          %p329 = pneg %p112
        $region46: #{tpu_custom_call.1} parent=43 // pred_check_branch
          %331 = sbr.rel (%p329) target = $region48
        $region47: #{tpu_custom_call.1} parent=43 // pred_region
          %s332 = sand.u32 %s97, 1
          %s333 = scalar_lea.sflag [#allocation4], %s332
          %s334 = sand.u32 %s97, 1
          %s335 = smul.addr %s334, 8
          %s336 = scalar_lea.vmem [#allocation5], %s335
          %337 = dma.done %s333, 128
        $region48: #{tpu_custom_call.1} parent=43 // pred_fallthru
          _
      $region44: #{tpu_custom_call.1} parent=5 // pred_fallthru
        _
    $region6: #{tpu_custom_call.1} parent=1 // loop_footer
      %s19 = sadd.s32 1, %s15
    $region7: #{tpu_custom_call.1} parent=1 // loop_footer_branch
      %14 = sbr.rel target = $region3
    $region8: #{tpu_custom_call.1} parent=1 // loop_exit
      _
    %338 = vsyncpa [#allocation3], 1
    %s339 = scalar_lea.sflag [#allocation3], 1
    %340 = vsyncpa %s339, 1
    %341 = vsyncpa [#allocation4], 1
    %s342 = scalar_lea.sflag [#allocation4], 1
    %343 = vsyncpa %s342, 1

</llo_original>
